<compile_context>
chip_gen: v5e
topology: v5e:2x2
jax: 0.10.0
libtpu: 0.0.40
codegen_flags: <defaults>
</compile_context>

<pallas_src>
import jax
import jax.numpy as jnp
from jax.experimental import pallas as pl
from jax.experimental.pallas import tpu as pltpu

IN_DIM = 773
H1 = 256
H2 = 128
OUT_DIM = 1


def _round_up(x, m):
    return (x + m - 1) // m * m


def _mlp_kernel(x_ref, w1_ref, b1_ref, w2_ref, b2_ref, w3_ref, b3_ref, o_ref):
    # int8 0/1 bitboards -> bf16 (exact) immediately before the MXU dot.
    x = x_ref[...].astype(jnp.bfloat16)                       # (tb, 773)

    # fc1: bf16 (tb, 773) @ bf16 (773, 256) -> f32 accumulation on the MXU
    # (Mosaic masks the unaligned last K tile; no HBM bytes spent on padding).
    h1 = jnp.dot(x, w1_ref[...], preferred_element_type=jnp.float32)
    h1 = jnp.maximum(h1 + b1_ref[...], 0.0)                   # bias + relu, f32

    # fc2: cast activation to bf16 for the MXU, accumulate in f32.
    h2 = jnp.dot(h1.astype(jnp.bfloat16), w2_ref[...],
                 preferred_element_type=jnp.float32)
    h2 = jnp.maximum(h2 + b2_ref[...], 0.0)                   # bias + relu, f32

    # fc3 (128 -> 1): VPU multiply + XLU lane reduction — keeps the 1-column
    # "matmul" off the MXU.  w3_ref is a (1, 128) f32 row.
    z = jnp.sum(h2 * w3_ref[...], axis=-1, keepdims=True)     # (tb, 1) f32
    o_ref[...] = jnp.tanh(z + b3_ref[...]).astype(o_ref.dtype)


def prepare_params(params):
    """f32 (in, out) params -> kernel-ready tensors (bf16 matmul weights)."""
    return {
        "w1": params["w1"].astype(jnp.bfloat16),                 # (773, 256)
        "b1": params["b1"].astype(jnp.float32),                  # (1, 256)
        "w2": params["w2"].astype(jnp.bfloat16),                 # (256, 128)
        "b2": params["b2"].astype(jnp.float32),                  # (1, 128)
        "w3": params["w3"].reshape(1, H2).astype(jnp.float32),   # (1, 128)
        "b3": params["b3"].astype(jnp.float32),                  # (1, 1)
    }


def _pick_batch_tile(B, batch_tile):
    """Batch tile: multiple of 32 (int8 (32,128) sublane packing), <= B, and
    >= 2 grid steps whenever the batch can be split (v7x has 2 TensorCores)."""
    cap = min(_round_up(batch_tile, 32), 2048)
    if B > cap:
        return cap                              # grid >= 2 automatically
    if B >= 64:
        return _round_up((B + 1) // 2, 32)      # >= 2 tiles, each mult. of 32
    return B                                    # tiny batch: full-dim block


def simple_chess_nn(x, prepared, *, batch_tile=1024):
    """Fused forward pass.

    x: (B, 773) int8/uint8 bitboard features (values 0/1).  Floating-point
    inputs are accepted but cost an extra HBM cast pass — emit int8 upstream.
    Returns (B, 1) float32.
    """
    if x.dtype not in (jnp.int8, jnp.uint8):
        x = x.astype(jnp.int8)  # fallback; producer should emit int8 directly

    w1, b1 = prepared["w1"], prepared["b1"]
    w2, b2 = prepared["w2"], prepared["b2"]
    w3, b3 = prepared["w3"], prepared["b3"]

    B = x.shape[0]
    tb = _pick_batch_tile(B, batch_tile)
    grid = (pl.cdiv(B, tb),)

    # Weights/biases are fully VMEM-resident; constant index_map -> the same
    # block is reused every grid step (no per-step re-DMA).
    full = lambda shape: pl.BlockSpec(shape, lambda i: (0, 0))

    cost = pl.CostEstimate(
        flops=int(2 * B * (IN_DIM * H1 + H1 * H2 + H2)),
        transcendentals=int(B),
        bytes_accessed=int(B * IN_DIM * 1                      # int8 x stream
                           + (w1.size + w2.size) * 2           # bf16 weights
                           + (b1.size + b2.size + w3.size + b3.size) * 4
                           + B * OUT_DIM * 4),                 # f32 output
    )

    return pl.pallas_call(
        _mlp_kernel,
        out_shape=jax.ShapeDtypeStruct((B, OUT_DIM), jnp.float32),
        grid_spec=pltpu.PrefetchScalarGridSpec(
            num_scalar_prefetch=0,
            grid=grid,
            in_specs=[
                # x tile: (tb, 773) int8, unpadded feature dim (full-dim block).
                pl.BlockSpec((tb, IN_DIM), lambda i: (i, 0)),
                full(w1.shape), full(b1.shape),
                full(w2.shape), full(b2.shape),
                full(w3.shape), full(b3.shape),
            ],
            out_specs=pl.BlockSpec((tb, OUT_DIM), lambda i: (i, 0)),
        ),
        compiler_params=pltpu.CompilerParams(
            dimension_semantics=("parallel",),   # batch tiles -> both v7x TCs
        ),
        cost_estimate=cost,
    )(x, w1, b1, w2, b2, w3, b3)


def init_params(key):
    """Deterministic synthetic init (same shapes/semantics as the nn.Module,
    stored as (in, out) so the kernel computes x @ W + b directly)."""
    k1, k2, k3, k4, k5, k6 = jax.random.split(key, 6)

    def unif(k, shape, fan_in):
        bound = 1.0 / jnp.sqrt(fan_in)
        return jax.random.uniform(k, shape, jnp.float32, -bound, bound)

    return {
        "w1": unif(k1, (IN_DIM, H1), IN_DIM),
        "b1": unif(k2, (1, H1), IN_DIM),
        "w2": unif(k3, (H1, H2), H1),
        "b2": unif(k4, (1, H2), H1),
        "w3": unif(k5, (H2, OUT_DIM), H2),
        "b3": unif(k6, (1, OUT_DIM), H2),
    }


def reference_forward(x, p):
    h1 = jnp.maximum(x @ p["w1"] + p["b1"], 0.0)
    h2 = jnp.maximum(h1 @ p["w2"] + p["b2"], 0.0)
    return jnp.tanh(h2 @ p["w3"] + p["b3"])


if __name__ == "__main__":
    key = jax.random.PRNGKey(0)
    kx1, kx2, kp = jax.random.split(key, 3)

    params = init_params(kp)
    prepared = prepare_params(params)

    # Small batch (single grid step).  Bitboard-like 0/1 features in int8, so
    # the only numeric perturbation vs. the f32 reference is the bf16 weights.
    B1 = 32
    x1 = (jax.random.uniform(kx1, (B1, IN_DIM)) < 0.5).astype(jnp.int8)
    out1 = jax.block_until_ready(simple_chess_nn(x1, prepared))
    ref1 = reference_forward(x1.astype(jnp.float32), params)
    assert out1.shape == (B1, 1), out1.shape
    assert jnp.allclose(out1, ref1, atol=1e-2, rtol=1e-2), (
        float(jnp.max(jnp.abs(out1 - ref1))))

    # Ragged batch exercising the multi-step pipelined grid: B=100 -> tb=64,
    # grid=2 with a partial last block (tail rows never written back).
    B2 = 100
    x2 = (jax.random.uniform(kx2, (B2, IN_DIM)) < 0.5).astype(jnp.int8)
    out2 = jax.block_until_ready(simple_chess_nn(x2, prepared))
    ref2 = reference_forward(x2.astype(jnp.float32), params)
    assert out2.shape == (B2, 1), out2.shape
    assert jnp.allclose(out2, ref2, atol=1e-2, rtol=1e-2), (
        float(jnp.max(jnp.abs(out2 - ref2))))

    print("KERNEL_OK")
</pallas_src>

<mosaic_0001>
module attributes {stable_mosaic.version = 11 : i64} {
  func.func @_mlp_kernel(%arg0: i32, %arg1: memref<32x773xi8, #tpu.memory_space<vmem>>, %arg2: memref<773x256xbf16, #tpu.memory_space<vmem>>, %arg3: memref<1x256xf32, #tpu.memory_space<vmem>>, %arg4: memref<256x128xbf16, #tpu.memory_space<vmem>>, %arg5: memref<1x128xf32, #tpu.memory_space<vmem>>, %arg6: memref<1x128xf32, #tpu.memory_space<vmem>>, %arg7: memref<1x1xf32, #tpu.memory_space<vmem>>, %arg8: memref<32x1xf32, #tpu.memory_space<vmem>>) attributes {dimension_semantics = [#tpu.dimension_semantics<parallel>], iteration_bounds = array<i64: 1>, scalar_prefetch = 0 : i64, scratch_operands = 0 : i64, tpu.core_type = #tpu.core_type<tc>, window_params = [{transform_indices = @transform_0, window_bounds = array<i64: 32, 773>}, {pipeline_mode = #tpu.pipeline_mode<synchronous>, transform_indices = @transform_1, window_bounds = array<i64: 773, 256>}, {pipeline_mode = #tpu.pipeline_mode<synchronous>, transform_indices = @transform_2, window_bounds = array<i64: 1, 256>}, {pipeline_mode = #tpu.pipeline_mode<synchronous>, transform_indices = @transform_3, window_bounds = array<i64: 256, 128>}, {pipeline_mode = #tpu.pipeline_mode<synchronous>, transform_indices = @transform_4, window_bounds = array<i64: 1, 128>}, {pipeline_mode = #tpu.pipeline_mode<synchronous>, transform_indices = @transform_5, window_bounds = array<i64: 1, 128>}, {pipeline_mode = #tpu.pipeline_mode<synchronous>, transform_indices = @transform_6, window_bounds = array<i64: 1, 1>}, {transform_indices = @transform_7, window_bounds = array<i64: 32, 1>}]} {
    %c0 = arith.constant 0 : index
    %c0_0 = arith.constant 0 : index
    %0 = vector.load %arg1[%c0, %c0_0] : memref<32x773xi8, #tpu.memory_space<vmem>>, vector<32x773xi8>
    %1 = arith.sitofp %0 : vector<32x773xi8> to vector<32x773xbf16>
    %c0_1 = arith.constant 0 : index
    %c0_2 = arith.constant 0 : index
    %2 = vector.load %arg2[%c0_1, %c0_2] : memref<773x256xbf16, #tpu.memory_space<vmem>>, vector<773x256xbf16>
    %cst = arith.constant dense<0.000000e+00> : vector<32x256xf32>
    %3 = tpu.matmul %1, %2, %cst {dimension_numbers = #tpu.dot_dimension_numbers<[1], [0], [0], [1], [0, 0, 1, 1], [], []>} : vector<32x773xbf16>, vector<773x256xbf16>, vector<32x256xf32> -> vector<32x256xf32>
    %c0_3 = arith.constant 0 : index
    %c0_4 = arith.constant 0 : index
    %4 = vector.load %arg3[%c0_3, %c0_4] : memref<1x256xf32, #tpu.memory_space<vmem>>, vector<1x256xf32>
    %5 = vector.broadcast %4 : vector<1x256xf32> to vector<32x256xf32>
    %6 = arith.addf %3, %5 : vector<32x256xf32>
    %cst_5 = arith.constant 0.000000e+00 : f32
    %7 = vector.broadcast %cst_5 : f32 to vector<32x256xf32>
    %8 = arith.maximumf %6, %7 : vector<32x256xf32>
    %9 = arith.truncf %8 : vector<32x256xf32> to vector<32x256xbf16>
    %c0_6 = arith.constant 0 : index
    %c0_7 = arith.constant 0 : index
    %10 = vector.load %arg4[%c0_6, %c0_7] : memref<256x128xbf16, #tpu.memory_space<vmem>>, vector<256x128xbf16>
    %cst_8 = arith.constant dense<0.000000e+00> : vector<32x128xf32>
    %11 = tpu.matmul %9, %10, %cst_8 {dimension_numbers = #tpu.dot_dimension_numbers<[1], [0], [0], [1], [0, 0, 1, 1], [], []>} : vector<32x256xbf16>, vector<256x128xbf16>, vector<32x128xf32> -> vector<32x128xf32>
    %c0_9 = arith.constant 0 : index
    %c0_10 = arith.constant 0 : index
    %12 = vector.load %arg5[%c0_9, %c0_10] : memref<1x128xf32, #tpu.memory_space<vmem>>, vector<1x128xf32>
    %13 = vector.broadcast %12 : vector<1x128xf32> to vector<32x128xf32>
    %14 = arith.addf %11, %13 : vector<32x128xf32>
    %cst_11 = arith.constant 0.000000e+00 : f32
    %15 = vector.broadcast %cst_11 : f32 to vector<32x128xf32>
    %16 = arith.maximumf %14, %15 : vector<32x128xf32>
    %c0_12 = arith.constant 0 : index
    %c0_13 = arith.constant 0 : index
    %17 = vector.load %arg6[%c0_12, %c0_13] : memref<1x128xf32, #tpu.memory_space<vmem>>, vector<1x128xf32>
    %18 = vector.broadcast %17 : vector<1x128xf32> to vector<32x128xf32>
    %19 = arith.mulf %16, %18 : vector<32x128xf32>
    %cst_14 = arith.constant dense<0.000000e+00> : vector<32xf32>
    %20 = vector.multi_reduction <add>, %19, %cst_14 [1] : vector<32x128xf32> to vector<32xf32>
    %21 = vector.shape_cast %20 : vector<32xf32> to vector<32x1xf32>
    %c0_15 = arith.constant 0 : index
    %c0_16 = arith.constant 0 : index
    %22 = vector.load %arg7[%c0_15, %c0_16] : memref<1x1xf32, #tpu.memory_space<vmem>>, vector<1x1xf32>
    %23 = vector.broadcast %22 : vector<1x1xf32> to vector<32x1xf32>
    %24 = arith.addf %21, %23 : vector<32x1xf32>
    %25 = math.tanh %24 : vector<32x1xf32>
    %c0_17 = arith.constant 0 : index
    %c0_18 = arith.constant 0 : index
    %26 = vector.load %arg8[%c0_17, %c0_18] : memref<32x1xf32, #tpu.memory_space<vmem>>, vector<32x1xf32>
    tpu.vector_store %arg8[%c0_17, %c0_18], %25 {strides = array<i32>} : memref<32x1xf32, #tpu.memory_space<vmem>>, vector<32x1xf32>,
    return
  }
  func.func @transform_0(%arg0: i32) -> (i32, i32) {
    %c0_i32 = arith.constant 0 : i32
    %c0_i32_0 = arith.constant 0 : i32
    return %arg0, %c0_i32 : i32, i32
  }
  func.func @transform_1(%arg0: i32) -> (i32, i32) {
    %c0_i32 = arith.constant 0 : i32
    %c0_i32_0 = arith.constant 0 : i32
    %c0_i32_1 = arith.constant 0 : i32
    return %c0_i32, %c0_i32_0 : i32, i32
  }
  func.func @transform_2(%arg0: i32) -> (i32, i32) {
    %c0_i32 = arith.constant 0 : i32
    %c0_i32_0 = arith.constant 0 : i32
    %c0_i32_1 = arith.constant 0 : i32
    return %c0_i32, %c0_i32_0 : i32, i32
  }
  func.func @transform_3(%arg0: i32) -> (i32, i32) {
    %c0_i32 = arith.constant 0 : i32
    %c0_i32_0 = arith.constant 0 : i32
    %c0_i32_1 = arith.constant 0 : i32
    return %c0_i32, %c0_i32_0 : i32, i32
  }
  func.func @transform_4(%arg0: i32) -> (i32, i32) {
    %c0_i32 = arith.constant 0 : i32
    %c0_i32_0 = arith.constant 0 : i32
    %c0_i32_1 = arith.constant 0 : i32
    return %c0_i32, %c0_i32_0 : i32, i32
  }
  func.func @transform_5(%arg0: i32) -> (i32, i32) {
    %c0_i32 = arith.constant 0 : i32
    %c0_i32_0 = arith.constant 0 : i32
    %c0_i32_1 = arith.constant 0 : i32
    return %c0_i32, %c0_i32_0 : i32, i32
  }
  func.func @transform_6(%arg0: i32) -> (i32, i32) {
    %c0_i32 = arith.constant 0 : i32
    %c0_i32_0 = arith.constant 0 : i32
    %c0_i32_1 = arith.constant 0 : i32
    return %c0_i32, %c0_i32_0 : i32, i32
  }
  func.func @transform_7(%arg0: i32) -> (i32, i32) {
    %c0_i32 = arith.constant 0 : i32
    %c0_i32_0 = arith.constant 0 : i32
    return %arg0, %c0_i32 : i32, i32
  }
}

</mosaic_0001>

<llo_original>
// kernel: tpu_custom_call.1
$region0: #{tpu_custom_call.1}
  #allocation0 [shape = 'u32[]', space=smem, size = 0x4, offset = 0x4, fixed_abs, tag = 'smem constant byte address 0x4 - core index']
  #allocation1 [shape = 'u32[72,128]{1,0:T(1,128)}', space=vmem, size = 0x9000, scoped, tag = 'internal scratch']
  #allocation2 [shape = 'f32[1,1]{1,0:T(1,128)S(1)}', space=vmem, size = 0x200, scoped, tag = 'scoped memory for tpu_custom_call.1']
  %s0 = inlined_call_operand.hbm [shape: s8[32,773], index: 0, kind: input, shape index: {}]
  %s1 = inlined_call_operand.hbm [shape: bf16[773,256], index: 1, kind: input, shape index: {}]
  %s2 = inlined_call_operand.vmem [shape: f32[1,256], index: 2, kind: input, shape index: {}]
  %s3 = inlined_call_operand.hbm [shape: bf16[256,128], index: 3, kind: input, shape index: {}]
  %s4 = inlined_call_operand.vmem [shape: f32[1,128], index: 4, kind: input, shape index: {}]
  %s5 = inlined_call_operand.vmem [shape: f32[1,128], index: 5, kind: input, shape index: {}]
  %s6 = inlined_call_operand.<no memory space> [shape: f32[1,1], index: 6, kind: input, shape index: {}]
  %s7 = inlined_call_operand.vmem [shape: f32[32,1], index: 7, kind: output, shape index: {}]
  %s8 = sld [smem:[#allocation0]]
  $region50: #{tpu_custom_call.1} parent=0
    _
  %s10 = ssub.s32 1, %s8
  %s11 = scalar_select 0, %s10, %s8
  %v12 = vstv %s6
  %13 = vst [vmem:[#allocation2] sm:$0x1] %v12
  $region1: #{tpu_custom_call.1} parent=0
    #allocation3 [shape = 'u8[28672]{0}', space=vmem, size = 0x7000, scoped, tag = 'input window, operand 0, single buffered']
    #allocation4 [shape = 's32[1]{0}', space=sflag, size = 0x4, scoped, tag = 'scoped memory for tpu_custom_call.1']
    #allocation5 [shape = 'u8[397312]{0}', space=vmem, size = 0x61000, scoped, tag = 'input window, operand 1, single buffered']
    #allocation6 [shape = 's32[1]{0}', space=sflag, size = 0x4, scoped, tag = 'scoped memory for tpu_custom_call.1']
    #allocation7 [shape = 'u8[65536]{0}', space=vmem, size = 0x10000, scoped, tag = 'input window, operand 3, single buffered']
    %14 = vsyncpa [#allocation4], 0
    %15 = vsyncpa [#allocation6], 0
    // Predicated region
    $region2: #{tpu_custom_call.1} parent=1 // pred_check
      _
    $region3: #{tpu_custom_call.1} parent=1 // pred_check_branch
      %17 = sbr.rel (0) target = $region5
    $region4: #{tpu_custom_call.1} parent=1 // pred_region
      %19 = vsyncadd [#allocation4], 0
      %s21 = sshll.u32 %s0, 4
      %s22 = int_to_ptr.hbm [resolvable:$true] %s21
      %s23 = sshll.u32 [#allocation3], 4
      %s24 = int_to_ptr.vmem [resolvable:$true] %s23
      %26 = dma.hbm_to_vmem [thread:$0]  %s22, 896, %s24, [#allocation4]
    $region5: #{tpu_custom_call.1} parent=1 // pred_fallthru
      _
    // Predicated region
    $region6: #{tpu_custom_call.1} parent=1 // pred_check
      _
    $region7: #{tpu_custom_call.1} parent=1 // pred_check_branch
      %28 = sbr.rel (0) target = $region9
    $region8: #{tpu_custom_call.1} parent=1 // pred_region
      %30 = vsyncadd [#allocation6], 0
      %s31 = sshll.u32 %s1, 4
      %s32 = int_to_ptr.hbm [resolvable:$true] %s31
      %s33 = sshll.u32 [#allocation5], 4
      %s34 = int_to_ptr.vmem [resolvable:$true] %s33
      %39 = dma.hbm_to_vmem [thread:$0]  %s32, 12416, %s34, [#allocation6], 128, 128, 8
    $region9: #{tpu_custom_call.1} parent=1 // pred_fallthru
      _
    // Predicated region
    $region10: #{tpu_custom_call.1} parent=1 // pred_check
      _
    $region11: #{tpu_custom_call.1} parent=1 // pred_check_branch
      %41 = sbr.rel (0) target = $region13
    $region12: #{tpu_custom_call.1} parent=1 // pred_region
      _
    $region13: #{tpu_custom_call.1} parent=1 // pred_fallthru
      _
    // Predicated region
    $region14: #{tpu_custom_call.1} parent=1 // pred_check
      _
    $region15: #{tpu_custom_call.1} parent=1 // pred_check_branch
      %43 = sbr.rel (0) target = $region17
    $region16: #{tpu_custom_call.1} parent=1 // pred_region
      %45 = vsyncadd [#allocation6], 0
      %s46 = sshll.u32 %s3, 4
      %s47 = int_to_ptr.hbm [resolvable:$true] %s46
      %s48 = sshll.u32 [#allocation7], 4
      %s49 = int_to_ptr.vmem [resolvable:$true] %s48
      %54 = dma.hbm_to_vmem [thread:$0]  %s47, 2048, %s49, [#allocation6], 64, 64, 4
    $region17: #{tpu_custom_call.1} parent=1 // pred_fallthru
      _
    // Predicated region
    $region18: #{tpu_custom_call.1} parent=1 // pred_check
      _
    $region19: #{tpu_custom_call.1} parent=1 // pred_check_branch
      %56 = sbr.rel (0) target = $region21
    $region20: #{tpu_custom_call.1} parent=1 // pred_region
      _
    $region21: #{tpu_custom_call.1} parent=1 // pred_fallthru
      _
    // Predicated region
    $region22: #{tpu_custom_call.1} parent=1 // pred_check
      _
    $region23: #{tpu_custom_call.1} parent=1 // pred_check_branch
      %58 = sbr.rel (0) target = $region25
    $region24: #{tpu_custom_call.1} parent=1 // pred_region
      _
    $region25: #{tpu_custom_call.1} parent=1 // pred_fallthru
      _
    // Predicated region
    $region26: #{tpu_custom_call.1} parent=1 // pred_check
      _
    $region27: #{tpu_custom_call.1} parent=1 // pred_check_branch
      %60 = sbr.rel (0) target = $region29
    $region28: #{tpu_custom_call.1} parent=1 // pred_region
      _
    $region29: #{tpu_custom_call.1} parent=1 // pred_fallthru
      _
    // Predicated region
    $region30: #{tpu_custom_call.1} parent=1 // pred_check
      _
    $region31: #{tpu_custom_call.1} parent=1 // pred_check_branch
      %62 = sbr.rel (0) target = $region33
    $region32: #{tpu_custom_call.1} parent=1 // pred_region
      %64 = dma.done [#allocation4], 896
    $region33: #{tpu_custom_call.1} parent=1 // pred_fallthru
      _
    // Predicated region
    $region34: #{tpu_custom_call.1} parent=1 // pred_check
      _
    $region35: #{tpu_custom_call.1} parent=1 // pred_check_branch
      %66 = sbr.rel (0) target = $region37
    $region36: #{tpu_custom_call.1} parent=1 // pred_region
      %68 = dma.done [#allocation6], 12416
    $region37: #{tpu_custom_call.1} parent=1 // pred_fallthru
      _
    // Predicated region
    $region38: #{tpu_custom_call.1} parent=1 // pred_check
      _
    $region39: #{tpu_custom_call.1} parent=1 // pred_check_branch
      %70 = sbr.rel (0) target = $region41
    $region40: #{tpu_custom_call.1} parent=1 // pred_region
      %72 = dma.done [#allocation6], 2048
    $region41: #{tpu_custom_call.1} parent=1 // pred_fallthru
      _
    %v74 = vld [vmem:[#allocation3] sm:$0xff]
    %v75 = vld [vmem:[#allocation3 + $0x8] sm:$0xff]
    %v76 = vld [vmem:[#allocation3 + $0x10] sm:$0xff]
    %v77 = vld [vmem:[#allocation3 + $0x18] sm:$0xff]
    %v78 = vld [vmem:[#allocation3 + $0x20] sm:$0xff]
    %v79 = vld [vmem:[#allocation3 + $0x28] sm:$0xff]
    %v80 = vld [vmem:[#allocation3 + $0x30] sm:$0xff]
    %v81 = vunpack.c.0.s8 %v74
    %v82 = vunpack.c.0.s8 %v75
    %v83 = vunpack.c.0.s8 %v76
    %v84 = vunpack.c.0.s8 %v77
    %v85 = vunpack.c.0.s8 %v78
    %v86 = vunpack.c.0.s8 %v79
    %v87 = vunpack.c.0.s8 %v80
    %v88 = vunpack.c.1.s8 %v74
    %v89 = vunpack.c.1.s8 %v75
    %v90 = vunpack.c.1.s8 %v76
    %v91 = vunpack.c.1.s8 %v77
    %v92 = vunpack.c.1.s8 %v78
    %v93 = vunpack.c.1.s8 %v79
    %v94 = vunpack.c.1.s8 %v80
    %v95 = vunpack.c.2.s8 %v74
    %v96 = vunpack.c.2.s8 %v75
    %v97 = vunpack.c.2.s8 %v76
    %v98 = vunpack.c.2.s8 %v77
    %v99 = vunpack.c.2.s8 %v78
    %v100 = vunpack.c.2.s8 %v79
    %v101 = vunpack.c.2.s8 %v80
    %v102 = vunpack.c.3.s8 %v74
    %v103 = vunpack.c.3.s8 %v75
    %v104 = vunpack.c.3.s8 %v76
    %v105 = vunpack.c.3.s8 %v77
    %v106 = vunpack.c.3.s8 %v78
    %v107 = vunpack.c.3.s8 %v79
    %v108 = vunpack.c.3.s8 %v80
    %v109 = vcvt.s32.f32 %v81
    %v110 = vcvt.s32.f32 %v82
    %v111 = vcvt.s32.f32 %v83
    %v112 = vcvt.s32.f32 %v84
    %v113 = vcvt.s32.f32 %v85
    %v114 = vcvt.s32.f32 %v86
    %v115 = vcvt.s32.f32 %v87
    %v116 = vcvt.s32.f32 %v88
    %v117 = vcvt.s32.f32 %v89
    %v118 = vcvt.s32.f32 %v90
    %v119 = vcvt.s32.f32 %v91
    %v120 = vcvt.s32.f32 %v92
    %v121 = vcvt.s32.f32 %v93
    %v122 = vcvt.s32.f32 %v94
    %v123 = vcvt.s32.f32 %v95
    %v124 = vcvt.s32.f32 %v96
    %v125 = vcvt.s32.f32 %v97
    %v126 = vcvt.s32.f32 %v98
    %v127 = vcvt.s32.f32 %v99
    %v128 = vcvt.s32.f32 %v100
    %v129 = vcvt.s32.f32 %v101
    %v130 = vcvt.s32.f32 %v102
    %v131 = vcvt.s32.f32 %v103
    %v132 = vcvt.s32.f32 %v104
    %v133 = vcvt.s32.f32 %v105
    %v134 = vcvt.s32.f32 %v106
    %v135 = vcvt.s32.f32 %v107
    %v136 = vcvt.s32.f32 %v108
    %v137 = vpack.c.bf16 %v116, %v109
    %v138 = vpack.c.bf16 %v117, %v110
    %v139 = vpack.c.bf16 %v118, %v111
    %v140 = vpack.c.bf16 %v119, %v112
    %v141 = vpack.c.bf16 %v120, %v113
    %v142 = vpack.c.bf16 %v121, %v114
    %v143 = vpack.c.bf16 %v122, %v115
    %v144 = vpack.c.bf16 %v130, %v123
    %v145 = vpack.c.bf16 %v131, %v124
    %v146 = vpack.c.bf16 %v132, %v125
    %v147 = vpack.c.bf16 %v133, %v126
    %v148 = vpack.c.bf16 %v134, %v127
    %v149 = vpack.c.bf16 %v135, %v128
    %v150 = vpack.c.bf16 %v136, %v129
    %v151 = vld [vmem:[#allocation5] sm:$0xff]
    %v152 = vld [vmem:[#allocation5 + $0x8] sm:$0xff]
    %v153 = vld [vmem:[#allocation5 + $0x10] sm:$0xff]
    %v154 = vld [vmem:[#allocation5 + $0x18] sm:$0xff]
    %v155 = vld [vmem:[#allocation5 + $0x20] sm:$0xff]
    %v156 = vld [vmem:[#allocation5 + $0x28] sm:$0xff]
    %v157 = vld [vmem:[#allocation5 + $0x30] sm:$0xff]
    %v158 = vld [vmem:[#allocation5 + $0x38] sm:$0xff]
    %v159 = vld [vmem:[#allocation5 + $0x40] sm:$0xff]
    %v160 = vld [vmem:[#allocation5 + $0x48] sm:$0xff]
    %v161 = vld [vmem:[#allocation5 + $0x50] sm:$0xff]
    %v162 = vld [vmem:[#allocation5 + $0x58] sm:$0xff]
    %v163 = vld [vmem:[#allocation5 + $0x60] sm:$0xff]
    %v164 = vld [vmem:[#allocation5 + $0x68] sm:$0xff]
    %v165 = vld [vmem:[#allocation5 + $0x70] sm:$0xff]
    %v166 = vld [vmem:[#allocation5 + $0x78] sm:$0xff]
    %v167 = vld [vmem:[#allocation5 + $0x80] sm:$0xff]
    %v168 = vld [vmem:[#allocation5 + $0x88] sm:$0xff]
    %v169 = vld [vmem:[#allocation5 + $0x90] sm:$0xff]
    %v170 = vld [vmem:[#allocation5 + $0x98] sm:$0xff]
    %v171 = vld [vmem:[#allocation5 + $0xa0] sm:$0xff]
    %v172 = vld [vmem:[#allocation5 + $0xa8] sm:$0xff]
    %v173 = vld [vmem:[#allocation5 + $0xb0] sm:$0xff]
    %v174 = vld [vmem:[#allocation5 + $0xb8] sm:$0xff]
    %v175 = vld [vmem:[#allocation5 + $0xc0] sm:$0xff]
    %v176 = vld [vmem:[#allocation5 + $0xc8] sm:$0xff]
    %v177 = vld [vmem:[#allocation5 + $0xd0] sm:$0xff]
    %v178 = vld [vmem:[#allocation5 + $0xd8] sm:$0xff]
    %v179 = vld [vmem:[#allocation5 + $0xe0] sm:$0xff]
    %v180 = vld [vmem:[#allocation5 + $0xe8] sm:$0xff]
    %v181 = vld [vmem:[#allocation5 + $0xf0] sm:$0xff]
    %v182 = vld [vmem:[#allocation5 + $0xf8] sm:$0xff]
    %v183 = vld [vmem:[#allocation5 + $0x100] sm:$0xff]
    %v184 = vld [vmem:[#allocation5 + $0x108] sm:$0xff]
    %v185 = vld [vmem:[#allocation5 + $0x110] sm:$0xff]
    %v186 = vld [vmem:[#allocation5 + $0x118] sm:$0xff]
    %v187 = vld [vmem:[#allocation5 + $0x120] sm:$0xff]
    %v188 = vld [vmem:[#allocation5 + $0x128] sm:$0xff]
    %v189 = vld [vmem:[#allocation5 + $0x130] sm:$0xff]
    %v190 = vld [vmem:[#allocation5 + $0x138] sm:$0xff]
    %v191 = vld [vmem:[#allocation5 + $0x140] sm:$0xff]
    %v192 = vld [vmem:[#allocation5 + $0x148] sm:$0xff]
    %v193 = vld [vmem:[#allocation5 + $0x150] sm:$0xff]
    %v194 = vld [vmem:[#allocation5 + $0x158] sm:$0xff]
    %v195 = vld [vmem:[#allocation5 + $0x160] sm:$0xff]
    %v196 = vld [vmem:[#allocation5 + $0x168] sm:$0xff]
    %v197 = vld [vmem:[#allocation5 + $0x170] sm:$0xff]
    %v198 = vld [vmem:[#allocation5 + $0x178] sm:$0xff]
    %v199 = vld [vmem:[#allocation5 + $0x180] sm:$0xff]
    %v200 = vld [vmem:[#allocation5 + $0x188] sm:$0xff]
    %v201 = vld [vmem:[#allocation5 + $0x190] sm:$0xff]
    %v202 = vld [vmem:[#allocation5 + $0x198] sm:$0xff]
    %v203 = vld [vmem:[#allocation5 + $0x1a0] sm:$0xff]
    %v204 = vld [vmem:[#allocation5 + $0x1a8] sm:$0xff]
    %v205 = vld [vmem:[#allocation5 + $0x1b0] sm:$0xff]
    %v206 = vld [vmem:[#allocation5 + $0x1b8] sm:$0xff]
    %v207 = vld [vmem:[#allocation5 + $0x1c0] sm:$0xff]
    %v208 = vld [vmem:[#allocation5 + $0x1c8] sm:$0xff]
    %v209 = vld [vmem:[#allocation5 + $0x1d0] sm:$0xff]
    %v210 = vld [vmem:[#allocation5 + $0x1d8] sm:$0xff]
    %v211 = vld [vmem:[#allocation5 + $0x1e0] sm:$0xff]
    %v212 = vld [vmem:[#allocation5 + $0x1e8] sm:$0xff]
    %v213 = vld [vmem:[#allocation5 + $0x1f0] sm:$0xff]
    %v214 = vld [vmem:[#allocation5 + $0x1f8] sm:$0xff]
    %v215 = vld [vmem:[#allocation5 + $0x200] sm:$0xff]
    %v216 = vld [vmem:[#allocation5 + $0x208] sm:$0xff]
    %v217 = vld [vmem:[#allocation5 + $0x210] sm:$0xff]
    %v218 = vld [vmem:[#allocation5 + $0x218] sm:$0xff]
    %v219 = vld [vmem:[#allocation5 + $0x220] sm:$0xff]
    %v220 = vld [vmem:[#allocation5 + $0x228] sm:$0xff]
    %v221 = vld [vmem:[#allocation5 + $0x230] sm:$0xff]
    %v222 = vld [vmem:[#allocation5 + $0x238] sm:$0xff]
    %v223 = vld [vmem:[#allocation5 + $0x240] sm:$0xff]
    %v224 = vld [vmem:[#allocation5 + $0x248] sm:$0xff]
    %v225 = vld [vmem:[#allocation5 + $0x250] sm:$0xff]
    %v226 = vld [vmem:[#allocation5 + $0x258] sm:$0xff]
    %v227 = vld [vmem:[#allocation5 + $0x260] sm:$0xff]
    %v228 = vld [vmem:[#allocation5 + $0x268] sm:$0xff]
    %v229 = vld [vmem:[#allocation5 + $0x270] sm:$0xff]
    %v230 = vld [vmem:[#allocation5 + $0x278] sm:$0xff]
    %v231 = vld [vmem:[#allocation5 + $0x280] sm:$0xff]
    %v232 = vld [vmem:[#allocation5 + $0x288] sm:$0xff]
    %v233 = vld [vmem:[#allocation5 + $0x290] sm:$0xff]
    %v234 = vld [vmem:[#allocation5 + $0x298] sm:$0xff]
    %v235 = vld [vmem:[#allocation5 + $0x2a0] sm:$0xff]
    %v236 = vld [vmem:[#allocation5 + $0x2a8] sm:$0xff]
    %v237 = vld [vmem:[#allocation5 + $0x2b0] sm:$0xff]
    %v238 = vld [vmem:[#allocation5 + $0x2b8] sm:$0xff]
    %v239 = vld [vmem:[#allocation5 + $0x2c0] sm:$0xff]
    %v240 = vld [vmem:[#allocation5 + $0x2c8] sm:$0xff]
    %v241 = vld [vmem:[#allocation5 + $0x2d0] sm:$0xff]
    %v242 = vld [vmem:[#allocation5 + $0x2d8] sm:$0xff]
    %v243 = vld [vmem:[#allocation5 + $0x2e0] sm:$0xff]
    %v244 = vld [vmem:[#allocation5 + $0x2e8] sm:$0xff]
    %v245 = vld [vmem:[#allocation5 + $0x2f0] sm:$0xff]
    %v246 = vld [vmem:[#allocation5 + $0x2f8] sm:$0xff]
    %v247 = vld [vmem:[#allocation5 + $0x300] sm:$0x77]
    %v248 = vld [vmem:[%s2] sm:$0x3]
    %v250 = vperm.slane %v248, 0
    %v251 = vperm.slane %v248, 1
    %v351 = vunpack.c.l.b16 %v151
    %v352 = vunpack.c.h.b16 %v151
    %v353 = vunpack.c.l.b16 %v152
    %v354 = vunpack.c.h.b16 %v152
    %v355 = vunpack.c.l.b16 %v153
    %v356 = vunpack.c.h.b16 %v153
    %v357 = vunpack.c.l.b16 %v154
    %v358 = vunpack.c.h.b16 %v154
    %v359 = vunpack.c.l.b16 %v155
    %v360 = vunpack.c.h.b16 %v155
    %v361 = vunpack.c.l.b16 %v156
    %v362 = vunpack.c.h.b16 %v156
    %v363 = vunpack.c.l.b16 %v157
    %v364 = vunpack.c.h.b16 %v157
    %v365 = vunpack.c.l.b16 %v158
    %v366 = vunpack.c.h.b16 %v158
    %v367 = vunpack.c.l.b16 %v159
    %v368 = vunpack.c.h.b16 %v159
    %v369 = vunpack.c.l.b16 %v160
    %v370 = vunpack.c.h.b16 %v160
    %v371 = vunpack.c.l.b16 %v161
    %v372 = vunpack.c.h.b16 %v161
    %v373 = vunpack.c.l.b16 %v162
    %v374 = vunpack.c.h.b16 %v162
    %v375 = vunpack.c.l.b16 %v163
    %v376 = vunpack.c.h.b16 %v163
    %v377 = vunpack.c.l.b16 %v164
    %v378 = vunpack.c.h.b16 %v164
    %v379 = vunpack.c.l.b16 %v165
    %v380 = vunpack.c.h.b16 %v165
    %v381 = vunpack.c.l.b16 %v166
    %v382 = vunpack.c.h.b16 %v166
    %v383 = vunpack.c.l.b16 %v167
    %v384 = vunpack.c.h.b16 %v167
    %v385 = vunpack.c.l.b16 %v168
    %v386 = vunpack.c.h.b16 %v168
    %v387 = vunpack.c.l.b16 %v169
    %v388 = vunpack.c.h.b16 %v169
    %v389 = vunpack.c.l.b16 %v170
    %v390 = vunpack.c.h.b16 %v170
    %v391 = vunpack.c.l.b16 %v171
    %v392 = vunpack.c.h.b16 %v171
    %v393 = vunpack.c.l.b16 %v172
    %v394 = vunpack.c.h.b16 %v172
    %v395 = vunpack.c.l.b16 %v173
    %v396 = vunpack.c.h.b16 %v173
    %v397 = vunpack.c.l.b16 %v174
    %v398 = vunpack.c.h.b16 %v174
    %v399 = vunpack.c.l.b16 %v175
    %v400 = vunpack.c.h.b16 %v175
    %v401 = vunpack.c.l.b16 %v176
    %v402 = vunpack.c.h.b16 %v176
    %v403 = vunpack.c.l.b16 %v177
    %v404 = vunpack.c.h.b16 %v177
    %v405 = vunpack.c.l.b16 %v178
    %v406 = vunpack.c.h.b16 %v178
    %v407 = vunpack.c.l.b16 %v179
    %v408 = vunpack.c.h.b16 %v179
    %v409 = vunpack.c.l.b16 %v180
    %v410 = vunpack.c.h.b16 %v180
    %v411 = vunpack.c.l.b16 %v181
    %v412 = vunpack.c.h.b16 %v181
    %v413 = vunpack.c.l.b16 %v182
    %v414 = vunpack.c.h.b16 %v182
    %v415 = vunpack.c.l.b16 %v183
    %v416 = vunpack.c.h.b16 %v183
    %v417 = vunpack.c.l.b16 %v184
    %v418 = vunpack.c.h.b16 %v184
    %v419 = vunpack.c.l.b16 %v185
    %v420 = vunpack.c.h.b16 %v185
    %v421 = vunpack.c.l.b16 %v186
    %v422 = vunpack.c.h.b16 %v186
    %v423 = vunpack.c.l.b16 %v187
    %v424 = vunpack.c.h.b16 %v187
    %v425 = vunpack.c.l.b16 %v188
    %v426 = vunpack.c.h.b16 %v188
    %v427 = vunpack.c.l.b16 %v189
    %v428 = vunpack.c.h.b16 %v189
    %v429 = vunpack.c.l.b16 %v190
    %v430 = vunpack.c.h.b16 %v190
    %v431 = vunpack.c.l.b16 %v191
    %v432 = vunpack.c.h.b16 %v191
    %v433 = vunpack.c.l.b16 %v192
    %v434 = vunpack.c.h.b16 %v192
    %v435 = vunpack.c.l.b16 %v193
    %v436 = vunpack.c.h.b16 %v193
    %v437 = vunpack.c.l.b16 %v194
    %v438 = vunpack.c.h.b16 %v194
    %v439 = vunpack.c.l.b16 %v195
    %v440 = vunpack.c.h.b16 %v195
    %v441 = vunpack.c.l.b16 %v196
    %v442 = vunpack.c.h.b16 %v196
    %v443 = vunpack.c.l.b16 %v197
    %v444 = vunpack.c.h.b16 %v197
    %v445 = vunpack.c.l.b16 %v198
    %v446 = vunpack.c.h.b16 %v198
    %v447 = vunpack.c.l.b16 %v199
    %v448 = vunpack.c.h.b16 %v199
    %v449 = vunpack.c.l.b16 %v200
    %v450 = vunpack.c.h.b16 %v200
    %v451 = vunpack.c.l.b16 %v201
    %v452 = vunpack.c.h.b16 %v201
    %v453 = vunpack.c.l.b16 %v202
    %v454 = vunpack.c.h.b16 %v202
    %v455 = vunpack.c.l.b16 %v203
    %v456 = vunpack.c.h.b16 %v203
    %v457 = vunpack.c.l.b16 %v204
    %v458 = vunpack.c.h.b16 %v204
    %v459 = vunpack.c.l.b16 %v205
    %v460 = vunpack.c.h.b16 %v205
    %v461 = vunpack.c.l.b16 %v206
    %v462 = vunpack.c.h.b16 %v206
    %v463 = vunpack.c.l.b16 %v207
    %v464 = vunpack.c.h.b16 %v207
    %v465 = vunpack.c.l.b16 %v208
    %v466 = vunpack.c.h.b16 %v208
    %v467 = vunpack.c.l.b16 %v209
    %v468 = vunpack.c.h.b16 %v209
    %v469 = vunpack.c.l.b16 %v210
    %v470 = vunpack.c.h.b16 %v210
    %v471 = vunpack.c.l.b16 %v211
    %v472 = vunpack.c.h.b16 %v211
    %v473 = vunpack.c.l.b16 %v212
    %v474 = vunpack.c.h.b16 %v212
    %v475 = vunpack.c.l.b16 %v213
    %v476 = vunpack.c.h.b16 %v213
    %v477 = vunpack.c.l.b16 %v214
    %v478 = vunpack.c.h.b16 %v214
    %v479 = vunpack.c.l.b16 %v215
    %v480 = vunpack.c.h.b16 %v215
    %v481 = vunpack.c.l.b16 %v216
    %v482 = vunpack.c.h.b16 %v216
    %v483 = vunpack.c.l.b16 %v217
    %v484 = vunpack.c.h.b16 %v217
    %v485 = vunpack.c.l.b16 %v218
    %v486 = vunpack.c.h.b16 %v218
    %v487 = vunpack.c.l.b16 %v219
    %v488 = vunpack.c.h.b16 %v219
    %v489 = vunpack.c.l.b16 %v220
    %v490 = vunpack.c.h.b16 %v220
    %v491 = vunpack.c.l.b16 %v221
    %v492 = vunpack.c.h.b16 %v221
    %v493 = vunpack.c.l.b16 %v222
    %v494 = vunpack.c.h.b16 %v222
    %v495 = vunpack.c.l.b16 %v223
    %v496 = vunpack.c.h.b16 %v223
    %v497 = vunpack.c.l.b16 %v224
    %v498 = vunpack.c.h.b16 %v224
    %v499 = vunpack.c.l.b16 %v225
    %v500 = vunpack.c.h.b16 %v225
    %v501 = vunpack.c.l.b16 %v226
    %v502 = vunpack.c.h.b16 %v226
    %v503 = vunpack.c.l.b16 %v227
    %v504 = vunpack.c.h.b16 %v227
    %v505 = vunpack.c.l.b16 %v228
    %v506 = vunpack.c.h.b16 %v228
    %v507 = vunpack.c.l.b16 %v229
    %v508 = vunpack.c.h.b16 %v229
    %v509 = vunpack.c.l.b16 %v230
    %v510 = vunpack.c.h.b16 %v230
    %v511 = vunpack.c.l.b16 %v231
    %v512 = vunpack.c.h.b16 %v231
    %v513 = vunpack.c.l.b16 %v232
    %v514 = vunpack.c.h.b16 %v232
    %v515 = vunpack.c.l.b16 %v233
    %v516 = vunpack.c.h.b16 %v233
    %v517 = vunpack.c.l.b16 %v234
    %v518 = vunpack.c.h.b16 %v234
    %v519 = vunpack.c.l.b16 %v235
    %v520 = vunpack.c.h.b16 %v235
    %v521 = vunpack.c.l.b16 %v236
    %v522 = vunpack.c.h.b16 %v236
    %v523 = vunpack.c.l.b16 %v237
    %v524 = vunpack.c.h.b16 %v237
    %v525 = vunpack.c.l.b16 %v238
    %v526 = vunpack.c.h.b16 %v238
    %v527 = vunpack.c.l.b16 %v239
    %v528 = vunpack.c.h.b16 %v239
    %v529 = vunpack.c.l.b16 %v240
    %v530 = vunpack.c.h.b16 %v240
    %v531 = vunpack.c.l.b16 %v241
    %v532 = vunpack.c.h.b16 %v241
    %v533 = vunpack.c.l.b16 %v242
    %v534 = vunpack.c.h.b16 %v242
    %v535 = vunpack.c.l.b16 %v243
    %v536 = vunpack.c.h.b16 %v243
    %v537 = vunpack.c.l.b16 %v244
    %v538 = vunpack.c.h.b16 %v244
    %v539 = vunpack.c.l.b16 %v245
    %v540 = vunpack.c.h.b16 %v245
    %v541 = vunpack.c.l.b16 %v246
    %v542 = vunpack.c.h.b16 %v246
    %v543 = vunpack.c.l.b16 %v247
    %v544 = vunpack.c.h.b16 %v247
    %v545 = vpack.c.b16 %v353, %v351
    %v546 = vpack.c.b16 %v354, %v352
    %v547 = vpack.c.b16 %v357, %v355
    %v548 = vpack.c.b16 %v358, %v356
    %v549 = vpack.c.b16 %v361, %v359
    %v550 = vpack.c.b16 %v362, %v360
    %v551 = vpack.c.b16 %v365, %v363
    %v552 = vpack.c.b16 %v366, %v364
    %v553 = vpack.c.b16 %v369, %v367
    %v554 = vpack.c.b16 %v370, %v368
    %v555 = vpack.c.b16 %v373, %v371
    %v556 = vpack.c.b16 %v374, %v372
    %v557 = vpack.c.b16 %v377, %v375
    %v558 = vpack.c.b16 %v378, %v376
    %v559 = vpack.c.b16 %v381, %v379
    %v560 = vpack.c.b16 %v382, %v380
    %v561 = vpack.c.b16 %v385, %v383
    %v562 = vpack.c.b16 %v386, %v384
    %v563 = vpack.c.b16 %v389, %v387
    %v564 = vpack.c.b16 %v390, %v388
    %v565 = vpack.c.b16 %v393, %v391
    %v566 = vpack.c.b16 %v394, %v392
    %v567 = vpack.c.b16 %v397, %v395
    %v568 = vpack.c.b16 %v398, %v396
    %v569 = vpack.c.b16 %v401, %v399
    %v570 = vpack.c.b16 %v402, %v400
    %v571 = vpack.c.b16 %v405, %v403
    %v572 = vpack.c.b16 %v406, %v404
    %v573 = vpack.c.b16 %v409, %v407
    %v574 = vpack.c.b16 %v410, %v408
    %v575 = vpack.c.b16 %v413, %v411
    %v576 = vpack.c.b16 %v414, %v412
    %v577 = vpack.c.b16 %v417, %v415
    %v578 = vpack.c.b16 %v418, %v416
    %v579 = vpack.c.b16 %v421, %v419
    %v580 = vpack.c.b16 %v422, %v420
    %v581 = vpack.c.b16 %v425, %v423
    %v582 = vpack.c.b16 %v426, %v424
    %v583 = vpack.c.b16 %v429, %v427
    %v584 = vpack.c.b16 %v430, %v428
    %v585 = vpack.c.b16 %v433, %v431
    %v586 = vpack.c.b16 %v434, %v432
    %v587 = vpack.c.b16 %v437, %v435
    %v588 = vpack.c.b16 %v438, %v436
    %v589 = vpack.c.b16 %v441, %v439
    %v590 = vpack.c.b16 %v442, %v440
    %v591 = vpack.c.b16 %v445, %v443
    %v592 = vpack.c.b16 %v446, %v444
    %v593 = vpack.c.b16 %v449, %v447
    %v594 = vpack.c.b16 %v450, %v448
    %v595 = vpack.c.b16 %v453, %v451
    %v596 = vpack.c.b16 %v454, %v452
    %v597 = vpack.c.b16 %v457, %v455
    %v598 = vpack.c.b16 %v458, %v456
    %v599 = vpack.c.b16 %v461, %v459
    %v600 = vpack.c.b16 %v462, %v460
    %v601 = vpack.c.b16 %v465, %v463
    %v602 = vpack.c.b16 %v466, %v464
    %v603 = vpack.c.b16 %v469, %v467
    %v604 = vpack.c.b16 %v470, %v468
    %v605 = vpack.c.b16 %v473, %v471
    %v606 = vpack.c.b16 %v474, %v472
    %v607 = vpack.c.b16 %v477, %v475
    %v608 = vpack.c.b16 %v478, %v476
    %v609 = vpack.c.b16 %v481, %v479
    %v610 = vpack.c.b16 %v482, %v480
    %v611 = vpack.c.b16 %v485, %v483
    %v612 = vpack.c.b16 %v486, %v484
    %v613 = vpack.c.b16 %v489, %v487
    %v614 = vpack.c.b16 %v490, %v488
    %v615 = vpack.c.b16 %v493, %v491
    %v616 = vpack.c.b16 %v494, %v492
    %v617 = vpack.c.b16 %v497, %v495
    %v618 = vpack.c.b16 %v498, %v496
    %v619 = vpack.c.b16 %v501, %v499
    %v620 = vpack.c.b16 %v502, %v500
    %v621 = vpack.c.b16 %v505, %v503
    %v622 = vpack.c.b16 %v506, %v504
    %v623 = vpack.c.b16 %v509, %v507
    %v624 = vpack.c.b16 %v510, %v508
    %v625 = vpack.c.b16 %v513, %v511
    %v626 = vpack.c.b16 %v514, %v512
    %v627 = vpack.c.b16 %v517, %v515
    %v628 = vpack.c.b16 %v518, %v516
    %v629 = vpack.c.b16 %v521, %v519
    %v630 = vpack.c.b16 %v522, %v520
    %v631 = vpack.c.b16 %v525, %v523
    %v632 = vpack.c.b16 %v526, %v524
    %v633 = vpack.c.b16 %v529, %v527
    %v634 = vpack.c.b16 %v530, %v528
    %v635 = vpack.c.b16 %v533, %v531
    %v636 = vpack.c.b16 %v534, %v532
    %v637 = vpack.c.b16 %v537, %v535
    %v638 = vpack.c.b16 %v538, %v536
    %v639 = vpack.c.b16 %v541, %v539
    %v640 = vpack.c.b16 %v542, %v540
    %v641 = vpack.c.b16 %v543, %v543
    %v642 = vpack.c.b16 %v544, %v544
    %vm739 = vcmask 39936
    %v741 = vsel %vm739, %v143, 0
    %v744 = vsel %vm739, %v150, 0
    %vm746 = vcmask 1041408
    %vm747 = vcmask 1042432
    %v748 = vsel %vm746, 4294967295, 65535
    %v749 = vsel %vm747, %v748, 0
    %v751 = vand.u32 %v641, %v749
    %v754 = vand.u32 %v642, %v749
    %756 = vmatpush.bf16.msra.mxu0 %v559
    %757 = vmatpush.bf16.msra.mxu0 %v557
    %758 = vmatpush.bf16.msra.mxu0 %v555
    %759 = vmatpush.bf16.msra.mxu0 %v553
    %760 = vmatpush.bf16.msra.mxu0 %v551
    %761 = vmatpush.bf16.msra.mxu0 %v549
    %762 = vmatpush.bf16.msra.mxu0 %v547
    %763 = vmatpush.bf16.msra.mxu0 %v545
    %764 = vmatmul.bf16.gmra.mxu0 %v137
    %v765 = vpop.f32.mrf.mxu0
    %v766 = vadd.f32 %v250, %v765
    %v767 = vpop.f32.mrf.mxu0
    %v768 = vadd.f32 %v250, %v767
    %769 = vmatmul.bf16.gmra.mxu0 %v144
    %v770 = vpop.f32.mrf.mxu0
    %v771 = vadd.f32 %v250, %v770
    %v772 = vpop.f32.mrf.mxu0
    %v773 = vadd.f32 %v250, %v772
    %774 = vdwg.mxu0
    %775 = vmatpush.bf16.msra.mxu0 %v575
    %776 = vmatpush.bf16.msra.mxu0 %v573
    %777 = vmatpush.bf16.msra.mxu0 %v571
    %778 = vmatpush.bf16.msra.mxu0 %v569
    %779 = vmatpush.bf16.msra.mxu0 %v567
    %780 = vmatpush.bf16.msra.mxu0 %v565
    %781 = vmatpush.bf16.msra.mxu0 %v563
    %782 = vmatpush.bf16.msra.mxu0 %v561
    %783 = vmatmul.bf16.gmra.mxu0 %v138
    %v784 = vpop.f32.mrf.mxu0
    %v785 = vadd.f32 %v766, %v784
    %v786 = vpop.f32.mrf.mxu0
    %v787 = vadd.f32 %v768, %v786
    %788 = vmatmul.bf16.gmra.mxu0 %v145
    %v789 = vpop.f32.mrf.mxu0
    %v790 = vadd.f32 %v771, %v789
    %v791 = vpop.f32.mrf.mxu0
    %v792 = vadd.f32 %v773, %v791
    %793 = vdwg.mxu0
    %794 = vmatpush.bf16.msra.mxu0 %v591
    %795 = vmatpush.bf16.msra.mxu0 %v589
    %796 = vmatpush.bf16.msra.mxu0 %v587
    %797 = vmatpush.bf16.msra.mxu0 %v585
    %798 = vmatpush.bf16.msra.mxu0 %v583
    %799 = vmatpush.bf16.msra.mxu0 %v581
    %800 = vmatpush.bf16.msra.mxu0 %v579
    %801 = vmatpush.bf16.msra.mxu0 %v577
    %802 = vmatmul.bf16.gmra.mxu0 %v139
    %v803 = vpop.f32.mrf.mxu0
    %v804 = vadd.f32 %v785, %v803
    %v805 = vpop.f32.mrf.mxu0
    %v806 = vadd.f32 %v787, %v805
    %807 = vmatmul.bf16.gmra.mxu0 %v146
    %v808 = vpop.f32.mrf.mxu0
    %v809 = vadd.f32 %v790, %v808
    %v810 = vpop.f32.mrf.mxu0
    %v811 = vadd.f32 %v792, %v810
    %812 = vdwg.mxu0
    %813 = vmatpush.bf16.msra.mxu0 %v607
    %814 = vmatpush.bf16.msra.mxu0 %v605
    %815 = vmatpush.bf16.msra.mxu0 %v603
    %816 = vmatpush.bf16.msra.mxu0 %v601
    %817 = vmatpush.bf16.msra.mxu0 %v599
    %818 = vmatpush.bf16.msra.mxu0 %v597
    %819 = vmatpush.bf16.msra.mxu0 %v595
    %820 = vmatpush.bf16.msra.mxu0 %v593
    %821 = vmatmul.bf16.gmra.mxu0 %v140
    %v822 = vpop.f32.mrf.mxu0
    %v823 = vadd.f32 %v804, %v822
    %v824 = vpop.f32.mrf.mxu0
    %v825 = vadd.f32 %v806, %v824
    %826 = vmatmul.bf16.gmra.mxu0 %v147
    %v827 = vpop.f32.mrf.mxu0
    %v828 = vadd.f32 %v809, %v827
    %v829 = vpop.f32.mrf.mxu0
    %v830 = vadd.f32 %v811, %v829
    %831 = vdwg.mxu0
    %832 = vmatpush.bf16.msra.mxu0 %v623
    %833 = vmatpush.bf16.msra.mxu0 %v621
    %834 = vmatpush.bf16.msra.mxu0 %v619
    %835 = vmatpush.bf16.msra.mxu0 %v617
    %836 = vmatpush.bf16.msra.mxu0 %v615
    %837 = vmatpush.bf16.msra.mxu0 %v613
    %838 = vmatpush.bf16.msra.mxu0 %v611
    %839 = vmatpush.bf16.msra.mxu0 %v609
    %840 = vmatmul.bf16.gmra.mxu0 %v141
    %v841 = vpop.f32.mrf.mxu0
    %v842 = vadd.f32 %v823, %v841
    %v843 = vpop.f32.mrf.mxu0
    %v844 = vadd.f32 %v825, %v843
    %845 = vmatmul.bf16.gmra.mxu0 %v148
    %v846 = vpop.f32.mrf.mxu0
    %v847 = vadd.f32 %v828, %v846
    %v848 = vpop.f32.mrf.mxu0
    %v849 = vadd.f32 %v830, %v848
    %850 = vdwg.mxu0
    %851 = vmatpush.bf16.msra.mxu0 %v639
    %852 = vmatpush.bf16.msra.mxu0 %v637
    %853 = vmatpush.bf16.msra.mxu0 %v635
    %854 = vmatpush.bf16.msra.mxu0 %v633
    %855 = vmatpush.bf16.msra.mxu0 %v631
    %856 = vmatpush.bf16.msra.mxu0 %v629
    %857 = vmatpush.bf16.msra.mxu0 %v627
    %858 = vmatpush.bf16.msra.mxu0 %v625
    %859 = vmatmul.bf16.gmra.mxu0 %v142
    %v860 = vpop.f32.mrf.mxu0
    %v861 = vadd.f32 %v842, %v860
    %v862 = vpop.f32.mrf.mxu0
    %v863 = vadd.f32 %v844, %v862
    %864 = vmatmul.bf16.gmra.mxu0 %v149
    %v865 = vpop.f32.mrf.mxu0
    %v866 = vadd.f32 %v847, %v865
    %v867 = vpop.f32.mrf.mxu0
    %v868 = vadd.f32 %v849, %v867
    %869 = vdwg.mxu0
    %870 = vmatpush.bf16.msra.mxu0 0
    %871 = vmatpush.bf16.msra.mxu0 0
    %872 = vmatpush.bf16.msra.mxu0 0
    %873 = vmatpush.bf16.msra.mxu0 0
    %874 = vmatpush.bf16.msra.mxu0 0
    %875 = vmatpush.bf16.msra.mxu0 0
    %876 = vmatpush.bf16.msra.mxu0 0
    %877 = vmatpush.bf16.msra.mxu0 %v751
    %878 = vmatmul.bf16.gmra.mxu0 %v741
    %v879 = vpop.f32.mrf.mxu0
    %v880 = vadd.f32 %v861, %v879
    %v881 = vpop.f32.mrf.mxu0
    %v882 = vadd.f32 %v863, %v881
    %883 = vmatmul.bf16.gmra.mxu0 %v744
    %v884 = vpop.f32.mrf.mxu0
    %v885 = vadd.f32 %v866, %v884
    %v886 = vpop.f32.mrf.mxu0
    %v887 = vadd.f32 %v868, %v886
    %888 = vdwg.mxu0
    %889 = vmatpush.bf16.msra.mxu0 %v560
    %890 = vmatpush.bf16.msra.mxu0 %v558
    %891 = vmatpush.bf16.msra.mxu0 %v556
    %892 = vmatpush.bf16.msra.mxu0 %v554
    %893 = vmatpush.bf16.msra.mxu0 %v552
    %894 = vmatpush.bf16.msra.mxu0 %v550
    %895 = vmatpush.bf16.msra.mxu0 %v548
    %896 = vmatpush.bf16.msra.mxu0 %v546
    %897 = vmatmul.bf16.gmra.mxu0 %v137
    %v898 = vpop.f32.mrf.mxu0
    %v899 = vadd.f32 %v251, %v898
    %v900 = vpop.f32.mrf.mxu0
    %v901 = vadd.f32 %v251, %v900
    %902 = vmatmul.bf16.gmra.mxu0 %v144
    %v903 = vpop.f32.mrf.mxu0
    %v904 = vadd.f32 %v251, %v903
    %v905 = vpop.f32.mrf.mxu0
    %v906 = vadd.f32 %v251, %v905
    %907 = vdwg.mxu0
    %908 = vmatpush.bf16.msra.mxu0 %v576
    %909 = vmatpush.bf16.msra.mxu0 %v574
    %910 = vmatpush.bf16.msra.mxu0 %v572
    %911 = vmatpush.bf16.msra.mxu0 %v570
    %912 = vmatpush.bf16.msra.mxu0 %v568
    %913 = vmatpush.bf16.msra.mxu0 %v566
    %914 = vmatpush.bf16.msra.mxu0 %v564
    %915 = vmatpush.bf16.msra.mxu0 %v562
    %916 = vmatmul.bf16.gmra.mxu0 %v138
    %v917 = vpop.f32.mrf.mxu0
    %v918 = vadd.f32 %v899, %v917
    %v919 = vpop.f32.mrf.mxu0
    %v920 = vadd.f32 %v901, %v919
    %921 = vmatmul.bf16.gmra.mxu0 %v145
    %v922 = vpop.f32.mrf.mxu0
    %v923 = vadd.f32 %v904, %v922
    %v924 = vpop.f32.mrf.mxu0
    %v925 = vadd.f32 %v906, %v924
    %926 = vdwg.mxu0
    %927 = vmatpush.bf16.msra.mxu0 %v592
    %928 = vmatpush.bf16.msra.mxu0 %v590
    %929 = vmatpush.bf16.msra.mxu0 %v588
    %930 = vmatpush.bf16.msra.mxu0 %v586
    %931 = vmatpush.bf16.msra.mxu0 %v584
    %932 = vmatpush.bf16.msra.mxu0 %v582
    %933 = vmatpush.bf16.msra.mxu0 %v580
    %934 = vmatpush.bf16.msra.mxu0 %v578
    %935 = vmatmul.bf16.gmra.mxu0 %v139
    %v936 = vpop.f32.mrf.mxu0
    %v937 = vadd.f32 %v918, %v936
    %v938 = vpop.f32.mrf.mxu0
    %v939 = vadd.f32 %v920, %v938
    %940 = vmatmul.bf16.gmra.mxu0 %v146
    %v941 = vpop.f32.mrf.mxu0
    %v942 = vadd.f32 %v923, %v941
    %v943 = vpop.f32.mrf.mxu0
    %v944 = vadd.f32 %v925, %v943
    %945 = vdwg.mxu0
    %946 = vmatpush.bf16.msra.mxu0 %v608
    %947 = vmatpush.bf16.msra.mxu0 %v606
    %948 = vmatpush.bf16.msra.mxu0 %v604
    %949 = vmatpush.bf16.msra.mxu0 %v602
    %950 = vmatpush.bf16.msra.mxu0 %v600
    %951 = vmatpush.bf16.msra.mxu0 %v598
    %952 = vmatpush.bf16.msra.mxu0 %v596
    %953 = vmatpush.bf16.msra.mxu0 %v594
    %954 = vmatmul.bf16.gmra.mxu0 %v140
    %v955 = vpop.f32.mrf.mxu0
    %v956 = vadd.f32 %v937, %v955
    %v957 = vpop.f32.mrf.mxu0
    %v958 = vadd.f32 %v939, %v957
    %959 = vmatmul.bf16.gmra.mxu0 %v147
    %v960 = vpop.f32.mrf.mxu0
    %v961 = vadd.f32 %v942, %v960
    %v962 = vpop.f32.mrf.mxu0
    %v963 = vadd.f32 %v944, %v962
    %964 = vdwg.mxu0
    %965 = vmatpush.bf16.msra.mxu0 %v624
    %966 = vmatpush.bf16.msra.mxu0 %v622
    %967 = vmatpush.bf16.msra.mxu0 %v620
    %968 = vmatpush.bf16.msra.mxu0 %v618
    %969 = vmatpush.bf16.msra.mxu0 %v616
    %970 = vmatpush.bf16.msra.mxu0 %v614
    %971 = vmatpush.bf16.msra.mxu0 %v612
    %972 = vmatpush.bf16.msra.mxu0 %v610
    %973 = vmatmul.bf16.gmra.mxu0 %v141
    %v974 = vpop.f32.mrf.mxu0
    %v975 = vadd.f32 %v956, %v974
    %v976 = vpop.f32.mrf.mxu0
    %v977 = vadd.f32 %v958, %v976
    %978 = vmatmul.bf16.gmra.mxu0 %v148
    %v979 = vpop.f32.mrf.mxu0
    %v980 = vadd.f32 %v961, %v979
    %v981 = vpop.f32.mrf.mxu0
    %v982 = vadd.f32 %v963, %v981
    %983 = vdwg.mxu0
    %984 = vmatpush.bf16.msra.mxu0 %v640
    %985 = vmatpush.bf16.msra.mxu0 %v638
    %986 = vmatpush.bf16.msra.mxu0 %v636
    %987 = vmatpush.bf16.msra.mxu0 %v634
    %988 = vmatpush.bf16.msra.mxu0 %v632
    %989 = vmatpush.bf16.msra.mxu0 %v630
    %990 = vmatpush.bf16.msra.mxu0 %v628
    %991 = vmatpush.bf16.msra.mxu0 %v626
    %992 = vmatmul.bf16.gmra.mxu0 %v142
    %v993 = vpop.f32.mrf.mxu0
    %v994 = vadd.f32 %v975, %v993
    %v995 = vpop.f32.mrf.mxu0
    %v996 = vadd.f32 %v977, %v995
    %997 = vmatmul.bf16.gmra.mxu0 %v149
    %v998 = vpop.f32.mrf.mxu0
    %v999 = vadd.f32 %v980, %v998
    %v1000 = vpop.f32.mrf.mxu0
    %v1001 = vadd.f32 %v982, %v1000
    %1002 = vdwg.mxu0
    %1003 = vmatpush.bf16.msra.mxu0 0
    %1004 = vmatpush.bf16.msra.mxu0 0
    %1005 = vmatpush.bf16.msra.mxu0 0
    %1006 = vmatpush.bf16.msra.mxu0 0
    %1007 = vmatpush.bf16.msra.mxu0 0
    %1008 = vmatpush.bf16.msra.mxu0 0
    %1009 = vmatpush.bf16.msra.mxu0 0
    %1010 = vmatpush.bf16.msra.mxu0 %v754
    %1011 = vmatmul.bf16.gmra.mxu0 %v741
    %v1012 = vpop.f32.mrf.mxu0
    %v1013 = vadd.f32 %v994, %v1012
    %v1014 = vpop.f32.mrf.mxu0
    %v1015 = vadd.f32 %v996, %v1014
    %1016 = vmatmul.bf16.gmra.mxu0 %v744
    %v1017 = vpop.f32.mrf.mxu0
    %v1018 = vadd.f32 %v999, %v1017
    %v1019 = vpop.f32.mrf.mxu0
    %v1020 = vadd.f32 %v1001, %v1019
    %1021 = vdwg.mxu0
    %v1022 = vmax.f32 %v880, 0.0
    %v1023 = vmax.f32 %v1013, 0.0
    %v1024 = vmax.f32 %v882, 0.0
    %v1025 = vmax.f32 %v1015, 0.0
    %v1026 = vmax.f32 %v885, 0.0
    %v1027 = vmax.f32 %v1018, 0.0
    %v1028 = vmax.f32 %v887, 0.0
    %v1029 = vmax.f32 %v1020, 0.0
    %v1030 = vpack.c.bf16 %v1024, %v1022
    %v1031 = vpack.c.bf16 %v1025, %v1023
    %v1032 = vpack.c.bf16 %v1028, %v1026
    %v1033 = vpack.c.bf16 %v1029, %v1027
    %v1034 = vld [vmem:[#allocation7] sm:$0xf]
    %v1035 = vld [vmem:[#allocation7 + $0x4] sm:$0xf]
    %v1036 = vld [vmem:[#allocation7 + $0x8] sm:$0xf]
    %v1037 = vld [vmem:[#allocation7 + $0xc] sm:$0xf]
    %v1038 = vld [vmem:[#allocation7 + $0x10] sm:$0xf]
    %v1039 = vld [vmem:[#allocation7 + $0x14] sm:$0xf]
    %v1040 = vld [vmem:[#allocation7 + $0x18] sm:$0xf]
    %v1041 = vld [vmem:[#allocation7 + $0x1c] sm:$0xf]
    %v1042 = vld [vmem:[#allocation7 + $0x20] sm:$0xf]
    %v1043 = vld [vmem:[#allocation7 + $0x24] sm:$0xf]
    %v1044 = vld [vmem:[#allocation7 + $0x28] sm:$0xf]
    %v1045 = vld [vmem:[#allocation7 + $0x2c] sm:$0xf]
    %v1046 = vld [vmem:[#allocation7 + $0x30] sm:$0xf]
    %v1047 = vld [vmem:[#allocation7 + $0x34] sm:$0xf]
    %v1048 = vld [vmem:[#allocation7 + $0x38] sm:$0xf]
    %v1049 = vld [vmem:[#allocation7 + $0x3c] sm:$0xf]
    %v1050 = vld [vmem:[#allocation7 + $0x40] sm:$0xf]
    %v1051 = vld [vmem:[#allocation7 + $0x44] sm:$0xf]
    %v1052 = vld [vmem:[#allocation7 + $0x48] sm:$0xf]
    %v1053 = vld [vmem:[#allocation7 + $0x4c] sm:$0xf]
    %v1054 = vld [vmem:[#allocation7 + $0x50] sm:$0xf]
    %v1055 = vld [vmem:[#allocation7 + $0x54] sm:$0xf]
    %v1056 = vld [vmem:[#allocation7 + $0x58] sm:$0xf]
    %v1057 = vld [vmem:[#allocation7 + $0x5c] sm:$0xf]
    %v1058 = vld [vmem:[#allocation7 + $0x60] sm:$0xf]
    %v1059 = vld [vmem:[#allocation7 + $0x64] sm:$0xf]
    %v1060 = vld [vmem:[#allocation7 + $0x68] sm:$0xf]
    %v1061 = vld [vmem:[#allocation7 + $0x6c] sm:$0xf]
    %v1062 = vld [vmem:[#allocation7 + $0x70] sm:$0xf]
    %v1063 = vld [vmem:[#allocation7 + $0x74] sm:$0xf]
    %v1064 = vld [vmem:[#allocation7 + $0x78] sm:$0xf]
    %v1065 = vld [vmem:[#allocation7 + $0x7c] sm:$0xf]
    %v1066 = vld [vmem:[%s4] sm:$0x1]
    %v1068 = vperm.slane %v1066, 0
    %v1102 = vunpack.c.l.b16 %v1034
    %v1103 = vunpack.c.l.b16 %v1035
    %v1104 = vunpack.c.l.b16 %v1036
    %v1105 = vunpack.c.l.b16 %v1037
    %v1106 = vunpack.c.l.b16 %v1038
    %v1107 = vunpack.c.l.b16 %v1039
    %v1108 = vunpack.c.l.b16 %v1040
    %v1109 = vunpack.c.l.b16 %v1041
    %v1110 = vunpack.c.l.b16 %v1042
    %v1111 = vunpack.c.l.b16 %v1043
    %v1112 = vunpack.c.l.b16 %v1044
    %v1113 = vunpack.c.l.b16 %v1045
    %v1114 = vunpack.c.l.b16 %v1046
    %v1115 = vunpack.c.l.b16 %v1047
    %v1116 = vunpack.c.l.b16 %v1048
    %v1117 = vunpack.c.l.b16 %v1049
    %v1118 = vunpack.c.l.b16 %v1050
    %v1119 = vunpack.c.l.b16 %v1051
    %v1120 = vunpack.c.l.b16 %v1052
    %v1121 = vunpack.c.l.b16 %v1053
    %v1122 = vunpack.c.l.b16 %v1054
    %v1123 = vunpack.c.l.b16 %v1055
    %v1124 = vunpack.c.l.b16 %v1056
    %v1125 = vunpack.c.l.b16 %v1057
    %v1126 = vunpack.c.l.b16 %v1058
    %v1127 = vunpack.c.l.b16 %v1059
    %v1128 = vunpack.c.l.b16 %v1060
    %v1129 = vunpack.c.l.b16 %v1061
    %v1130 = vunpack.c.l.b16 %v1062
    %v1131 = vunpack.c.l.b16 %v1063
    %v1132 = vunpack.c.l.b16 %v1064
    %v1133 = vunpack.c.l.b16 %v1065
    %v1134 = vpack.c.b16 %v1103, %v1102
    %v1135 = vpack.c.b16 %v1105, %v1104
    %v1136 = vpack.c.b16 %v1107, %v1106
    %v1137 = vpack.c.b16 %v1109, %v1108
    %v1138 = vpack.c.b16 %v1111, %v1110
    %v1139 = vpack.c.b16 %v1113, %v1112
    %v1140 = vpack.c.b16 %v1115, %v1114
    %v1141 = vpack.c.b16 %v1117, %v1116
    %v1142 = vpack.c.b16 %v1119, %v1118
    %v1143 = vpack.c.b16 %v1121, %v1120
    %v1144 = vpack.c.b16 %v1123, %v1122
    %v1145 = vpack.c.b16 %v1125, %v1124
    %v1146 = vpack.c.b16 %v1127, %v1126
    %v1147 = vpack.c.b16 %v1129, %v1128
    %v1148 = vpack.c.b16 %v1131, %v1130
    %v1149 = vpack.c.b16 %v1133, %v1132
    %1166 = vmatpush.bf16.msra.mxu0 %v1141
    %1167 = vmatpush.bf16.msra.mxu0 %v1140
    %1168 = vmatpush.bf16.msra.mxu0 %v1139
    %1169 = vmatpush.bf16.msra.mxu0 %v1138
    %1170 = vmatpush.bf16.msra.mxu0 %v1137
    %1171 = vmatpush.bf16.msra.mxu0 %v1136
    %1172 = vmatpush.bf16.msra.mxu0 %v1135
    %1173 = vmatpush.bf16.msra.mxu0 %v1134
    %1174 = vmatmul.bf16.gmra.mxu0 %v1030
    %v1175 = vpop.f32.mrf.mxu0
    %v1176 = vadd.f32 %v1068, %v1175
    %v1177 = vpop.f32.mrf.mxu0
    %v1178 = vadd.f32 %v1068, %v1177
    %1179 = vmatmul.bf16.gmra.mxu0 %v1032
    %v1180 = vpop.f32.mrf.mxu0
    %v1181 = vadd.f32 %v1068, %v1180
    %v1182 = vpop.f32.mrf.mxu0
    %v1183 = vadd.f32 %v1068, %v1182
    %1184 = vdwg.mxu0
    %1185 = vmatpush.bf16.msra.mxu0 %v1149
    %1186 = vmatpush.bf16.msra.mxu0 %v1148
    %1187 = vmatpush.bf16.msra.mxu0 %v1147
    %1188 = vmatpush.bf16.msra.mxu0 %v1146
    %1189 = vmatpush.bf16.msra.mxu0 %v1145
    %1190 = vmatpush.bf16.msra.mxu0 %v1144
    %1191 = vmatpush.bf16.msra.mxu0 %v1143
    %1192 = vmatpush.bf16.msra.mxu0 %v1142
    %1193 = vmatmul.bf16.gmra.mxu0 %v1031
    %v1194 = vpop.f32.mrf.mxu0
    %v1195 = vadd.f32 %v1176, %v1194
    %v1196 = vpop.f32.mrf.mxu0
    %v1197 = vadd.f32 %v1178, %v1196
    %1198 = vmatmul.bf16.gmra.mxu0 %v1033
    %v1199 = vpop.f32.mrf.mxu0
    %v1200 = vadd.f32 %v1181, %v1199
    %v1201 = vpop.f32.mrf.mxu0
    %v1202 = vadd.f32 %v1183, %v1201
    %1203 = vdwg.mxu0
    %v1204 = vmax.f32 %v1195, 0.0
    %v1205 = vmax.f32 %v1197, 0.0
    %v1206 = vmax.f32 %v1200, 0.0
    %v1207 = vmax.f32 %v1202, 0.0
    %v1208 = vld [vmem:[%s5] sm:$0x1]
    %v1210 = vperm.slane %v1208, 0
    %v1212 = vmul.f32 %v1204, %v1210
    %v1213 = vmul.f32 %v1205, %v1210
    %v1214 = vmul.f32 %v1206, %v1210
    %v1215 = vmul.f32 %v1207, %v1210
    %1216 = vadd.xlane.f32.xlu0 %v1212
    %v1217 = vpop.xlane.xlu0 %1216
    %1218 = vadd.xlane.f32.xlu0 %v1213
    %v1219 = vpop.xlane.xlu0 %1218
    %1220 = vadd.xlane.f32.xlu0 %v1214
    %v1221 = vpop.xlane.xlu0 %1220
    %1222 = vadd.xlane.f32.xlu0 %v1215
    %v1223 = vpop.xlane.xlu0 %1222
    %v1224 = vld [vmem:[#allocation2] sm:$0x1]
    %v1226 = vperm.slane %v1224, 0
    %v1228 = vadd.f32 %v1217, %v1226
    %v1229 = vadd.f32 %v1219, %v1226
    %v1230 = vadd.f32 %v1221, %v1226
    %v1231 = vadd.f32 %v1223, %v1226
    %v1232 = vtanh.pop %v1228
    %v1233 = vtanh.pop %v1229
    %v1234 = vtanh.pop %v1230
    %v1235 = vtanh.pop %v1231
    %vm1236 = vcmask 7168
    %1237 = vst.msk [vmem:[%s7] sm:$0xff] %vm1236, %v1232
    %1238 = vst.msk [vmem:[%s7 + $0x8] sm:$0xff] %vm1236, %v1233
    %1239 = vst.msk [vmem:[%s7 + $0x10] sm:$0xff] %vm1236, %v1234
    %1240 = vst.msk [vmem:[%s7 + $0x18] sm:$0xff] %vm1236, %v1235
    // Predicated region
    $region42: #{tpu_custom_call.1} parent=1 // pred_check
      _
    $region43: #{tpu_custom_call.1} parent=1 // pred_check_branch
      %1242 = sbr.rel (0) target = $region45
    $region44: #{tpu_custom_call.1} parent=1 // pred_region
      _
    $region45: #{tpu_custom_call.1} parent=1 // pred_fallthru
      _
    // Predicated region
    $region46: #{tpu_custom_call.1} parent=1 // pred_check
      _
    $region47: #{tpu_custom_call.1} parent=1 // pred_check_branch
      %1244 = sbr.rel (0) target = $region49
    $region48: #{tpu_custom_call.1} parent=1 // pred_region
      _
    $region49: #{tpu_custom_call.1} parent=1 // pred_fallthru
      _
    %1245 = vsyncpa [#allocation4], 1
    %1246 = vsyncpa [#allocation6], 1

</llo_original>
